<compile_context>
chip_gen: v5e
topology: v5e:2x2
jax: 0.10.0
libtpu: 0.0.40
codegen_flags: <defaults>
</compile_context>

<pallas_src>
import jax
import jax.numpy as jnp
from jax import lax
from jax.experimental import pallas as pl
from jax.experimental.pallas import tpu as pltpu


def _fused_gather_kernel(idx_ref, ivec_ref, fslab_t_ref, ivec_out_ref, fslab_out_ref):
    """Fused row-gather of one int vector and one packed float slab.

    idx_ref      : VMEM (M, 1)     int32   gather indices
    ivec_ref     : VMEM (1, N)     int32   int table (nodes on the lane axis)
    fslab_t_ref  : VMEM (Dpad, N)  float32 packed float tables, feature-major
    ivec_out_ref : VMEM (M, 1)     int32
    fslab_out_ref: VMEM (M, Dpad)  float32 (lane-dense, Dpad % 128 == 0)
    """
    m = idx_ref.shape[0]
    n = ivec_ref.shape[1]

    idx = idx_ref[...]                              # (m, 1) int32
    idx = jnp.where(idx < 0, idx + n, idx)          # PyTorch-style negative indices

    node_ids = lax.broadcasted_iota(jnp.int32, (m, n), 1)
    sel = node_ids == idx                           # (m, n) bool, one-hot per row

    # Exact int32 gather: masked select + lane-axis sum (exactly one hit per row).
    ivals = jnp.where(sel, ivec_ref[...], 0)        # (m, n) int32
    ivec_out_ref[...] = jnp.sum(ivals, axis=1, keepdims=True)

    # Exact float gather: sel[i, k] picks column k of the transposed slab.
    slab_t = fslab_t_ref[...]                       # (dpad, n) float32
    picked = jnp.where(sel[:, None, :], slab_t[None, :, :], 0.0)   # (m, dpad, n)
    fslab_out_ref[...] = jnp.sum(picked, axis=-1)   # (m, dpad), lane-dense store


def fused_index_select(idx, int_vec, float_mats):
    """Fused Pallas equivalent of:
         int_out    = int_vec[idx]
         float_outs = [m[idx] for m in float_mats]
    All tables must share the same number of rows N.
    """
    idx = jnp.asarray(idx)
    int_vec = jnp.asarray(int_vec)
    mats = [jnp.asarray(x) for x in float_mats]

    m = int(idx.shape[0])
    n = int(int_vec.shape[0])
    int_dtype = int_vec.dtype
    f_dtypes = [x.dtype for x in mats]
    f_widths = [int(x.shape[1]) for x in mats]

    # Pack co-indexed float tables into one slab, pad lanes to a multiple of 128
    # so the kernel's float output is lane-dense (unmasked stores).
    slab = jnp.concatenate([x.astype(jnp.float32) for x in mats], axis=1)   # (n, f)
    f = int(slab.shape[1])
    dpad = ((f + 127) // 128) * 128
    slab = jnp.pad(slab, ((0, 0), (0, dpad - f)))
    slab_t = slab.T                                                         # (dpad, n)

    idx2 = idx.astype(jnp.int32).reshape(m, 1)
    ivec_row = int_vec.astype(jnp.int32).reshape(1, n)

    out_int, out_flt = pl.pallas_call(
        _fused_gather_kernel,
        out_shape=(
            jax.ShapeDtypeStruct((m, 1), jnp.int32),
            jax.ShapeDtypeStruct((m, dpad), jnp.float32),
        ),
        grid=(1,),
        # Block shapes equal the full array shapes -> no (8,128) tiling constraint;
        # everything lives in VMEM for the single grid step (tables are tiny here).
        in_specs=[
            pl.BlockSpec((m, 1), lambda i: (0, 0)),
            pl.BlockSpec((1, n), lambda i: (0, 0)),
            pl.BlockSpec((dpad, n), lambda i: (0, 0)),
        ],
        out_specs=(
            pl.BlockSpec((m, 1), lambda i: (0, 0)),
            pl.BlockSpec((m, dpad), lambda i: (0, 0)),
        ),
        compiler_params=pltpu.CompilerParams(dimension_semantics=("arbitrary",)),
    )(idx2, ivec_row, slab_t)

    int_out = out_int[:, 0].astype(int_dtype)
    float_outs = []
    off = 0
    for w, dt in zip(f_widths, f_dtypes):
        float_outs.append(out_flt[:, off:off + w].astype(dt))
        off += w
    return int_out, float_outs


class HL:
    """Stand-in for the `h_l` attribute container."""

    def __init__(self, complex_pos_batch, complex_pos):
        self.complex_pos_batch = complex_pos_batch
        self.complex_pos = complex_pos


def node_sampling_forward(h_t, h_l=None):
    """JAX/Pallas equivalent of NodeSampling.forward (functional, no in-place)."""
    target_idx = h_t['target_idx']
    h_t = dict(h_t)
    batch_g, (xyz_g, emb_g) = fused_index_select(
        target_idx, h_t['batch'], [h_t['xyz'], h_t['embedding_1']])
    h_t['batch'] = batch_g
    h_t['xyz'] = xyz_g
    h_t['embedding_1'] = emb_g
    if h_l is not None:
        complex_idx = h_t['complex_idx']
        cpb_g, (cp_g,) = fused_index_select(
            complex_idx, h_l.complex_pos_batch, [h_l.complex_pos])
        return h_t, HL(cpb_g, cp_g)
    return h_t


if __name__ == "__main__":
    key = jax.random.PRNGKey(0)
    k1, k2, k3, k4, k5, k6, k7 = jax.random.split(key, 7)

    N = 16          # number of target-graph nodes
    D = 32          # embedding width
    M = 8           # number of sampled target nodes
    L = 12          # number of complex nodes
    M2 = 8          # number of sampled complex nodes

    h_t = {
        'batch': jax.random.randint(k1, (N,), 0, 2, dtype=jnp.int32),
        'xyz': jax.random.normal(k2, (N, 3), dtype=jnp.float32),
        'embedding_1': jax.random.normal(k3, (N, D), dtype=jnp.float32),
        'target_idx': jax.random.randint(k4, (M,), 0, N, dtype=jnp.int32),
        'complex_idx': jax.random.randint(k5, (M2,), 0, L, dtype=jnp.int32),
    }
    h_l = HL(
        complex_pos_batch=jax.random.randint(k6, (L,), 0, 2, dtype=jnp.int32),
        complex_pos=jax.random.normal(k7, (L, 3), dtype=jnp.float32),
    )

    out_h_t, out_h_l = node_sampling_forward(h_t, h_l)
    jax.block_until_ready(
        (out_h_t['batch'], out_h_t['xyz'], out_h_t['embedding_1'],
         out_h_l.complex_pos_batch, out_h_l.complex_pos))

    # Reference check against plain jnp indexing.
    ti = h_t['target_idx']
    ci = h_t['complex_idx']
    assert jnp.array_equal(out_h_t['batch'], h_t['batch'][ti])
    assert jnp.allclose(out_h_t['xyz'], h_t['xyz'][ti])
    assert jnp.allclose(out_h_t['embedding_1'], h_t['embedding_1'][ti])
    assert jnp.array_equal(out_h_l.complex_pos_batch, h_l.complex_pos_batch[ci])
    assert jnp.allclose(out_h_l.complex_pos, h_l.complex_pos[ci])

    # h_l=None branch of the module.
    out_only = node_sampling_forward(h_t)
    jax.block_until_ready(out_only['embedding_1'])
    assert jnp.array_equal(out_only['batch'], h_t['batch'][ti])
    assert jnp.allclose(out_only['xyz'], h_t['xyz'][ti])
    assert jnp.allclose(out_only['embedding_1'], h_t['embedding_1'][ti])

    print("KERNEL_OK")
</pallas_src>

<mosaic_0001>
module attributes {stable_mosaic.version = 11 : i64} {
  func.func @_fused_gather_kernel(%arg0: i32, %arg1: memref<8x1xi32, #tpu.memory_space<vmem>>, %arg2: memref<1x16xi32, #tpu.memory_space<vmem>>, %arg3: memref<128x16xf32, #tpu.memory_space<vmem>>, %arg4: memref<8x1xi32, #tpu.memory_space<vmem>>, %arg5: memref<8x128xf32, #tpu.memory_space<vmem>>) attributes {dimension_semantics = [#tpu.dimension_semantics<arbitrary>], iteration_bounds = array<i64: 1>, scalar_prefetch = 0 : i64, scratch_operands = 0 : i64, tpu.core_type = #tpu.core_type<tc>, window_params = [{pipeline_mode = #tpu.pipeline_mode<synchronous>, transform_indices = @transform_0, window_bounds = array<i64: 8, 1>}, {pipeline_mode = #tpu.pipeline_mode<synchronous>, transform_indices = @transform_1, window_bounds = array<i64: 1, 16>}, {pipeline_mode = #tpu.pipeline_mode<synchronous>, transform_indices = @transform_2, window_bounds = array<i64: 128, 16>}, {pipeline_mode = #tpu.pipeline_mode<synchronous>, transform_indices = @transform_3, window_bounds = array<i64: 8, 1>}, {pipeline_mode = #tpu.pipeline_mode<synchronous>, transform_indices = @transform_4, window_bounds = array<i64: 8, 128>}]} {
    %c0 = arith.constant 0 : index
    %c0_0 = arith.constant 0 : index
    %0 = vector.load %arg1[%c0, %c0_0] : memref<8x1xi32, #tpu.memory_space<vmem>>, vector<8x1xi32>
    %c0_i32 = arith.constant 0 : i32
    %1 = vector.broadcast %c0_i32 : i32 to vector<8x1xi32>
    %2 = arith.cmpi slt, %0, %1 : vector<8x1xi32>
    %c16_i32 = arith.constant 16 : i32
    %3 = vector.broadcast %c16_i32 : i32 to vector<8x1xi32>
    %4 = arith.addi %0, %3 : vector<8x1xi32>
    %5 = arith.select %2, %4, %0 : vector<8x1xi1>, vector<8x1xi32>
    %6 = tpu.iota {dimensions = array<i32: 1>} : vector<8x16xi32>
    %7 = vector.broadcast %5 : vector<8x1xi32> to vector<8x16xi32>
    %8 = arith.cmpi eq, %6, %7 : vector<8x16xi32>
    %c0_1 = arith.constant 0 : index
    %c0_2 = arith.constant 0 : index
    %9 = vector.load %arg2[%c0_1, %c0_2] : memref<1x16xi32, #tpu.memory_space<vmem>>, vector<1x16xi32>
    %c0_i32_3 = arith.constant 0 : i32
    %10 = vector.shape_cast %9 : vector<1x16xi32> to vector<1x16xi32>
    %11 = vector.broadcast %10 : vector<1x16xi32> to vector<8x16xi32>
    %12 = vector.broadcast %c0_i32_3 : i32 to vector<8x16xi32>
    %13 = arith.select %8, %11, %12 : vector<8x16xi1>, vector<8x16xi32>
    %cst = arith.constant dense<0> : vector<8xi32>
    %14 = vector.multi_reduction <add>, %13, %cst [1] : vector<8x16xi32> to vector<8xi32>
    %15 = vector.shape_cast %14 : vector<8xi32> to vector<8x1xi32>
    %c0_4 = arith.constant 0 : index
    %c0_5 = arith.constant 0 : index
    %16 = vector.load %arg4[%c0_4, %c0_5] : memref<8x1xi32, #tpu.memory_space<vmem>>, vector<8x1xi32>
    tpu.vector_store %arg4[%c0_4, %c0_5], %15 {strides = array<i32>} : memref<8x1xi32, #tpu.memory_space<vmem>>, vector<8x1xi32>,
    %c0_6 = arith.constant 0 : index
    %c0_7 = arith.constant 0 : index
    %17 = vector.load %arg3[%c0_6, %c0_7] : memref<128x16xf32, #tpu.memory_space<vmem>>, vector<128x16xf32>
    %18 = vector.shape_cast %8 : vector<8x16xi1> to vector<8x1x16xi1>
    %19 = vector.shape_cast %17 : vector<128x16xf32> to vector<1x128x16xf32>
    %cst_8 = arith.constant 0.000000e+00 : f32
    %20 = vector.shape_cast %18 : vector<8x1x16xi1> to vector<8x1x16xi1>
    %21 = vector.broadcast %20 : vector<8x1x16xi1> to vector<8x128x16xi1>
    %22 = vector.shape_cast %19 : vector<1x128x16xf32> to vector<1x128x16xf32>
    %23 = vector.broadcast %22 : vector<1x128x16xf32> to vector<8x128x16xf32>
    %24 = vector.broadcast %cst_8 : f32 to vector<8x128x16xf32>
    %25 = arith.select %21, %23, %24 : vector<8x128x16xi1>, vector<8x128x16xf32>
    %cst_9 = arith.constant dense<0.000000e+00> : vector<8x128xf32>
    %26 = vector.multi_reduction <add>, %25, %cst_9 [2] : vector<8x128x16xf32> to vector<8x128xf32>
    %c0_10 = arith.constant 0 : index
    %c0_11 = arith.constant 0 : index
    %27 = vector.load %arg5[%c0_10, %c0_11] : memref<8x128xf32, #tpu.memory_space<vmem>>, vector<8x128xf32>
    tpu.vector_store %arg5[%c0_10, %c0_11], %26 {strides = array<i32>} : memref<8x128xf32, #tpu.memory_space<vmem>>, vector<8x128xf32>,
    return
  }
  func.func @transform_0(%arg0: i32) -> (i32, i32) {
    %c0_i32 = arith.constant 0 : i32
    %c0_i32_0 = arith.constant 0 : i32
    %c0_i32_1 = arith.constant 0 : i32
    return %c0_i32, %c0_i32_0 : i32, i32
  }
  func.func @transform_1(%arg0: i32) -> (i32, i32) {
    %c0_i32 = arith.constant 0 : i32
    %c0_i32_0 = arith.constant 0 : i32
    %c0_i32_1 = arith.constant 0 : i32
    return %c0_i32, %c0_i32_0 : i32, i32
  }
  func.func @transform_2(%arg0: i32) -> (i32, i32) {
    %c0_i32 = arith.constant 0 : i32
    %c0_i32_0 = arith.constant 0 : i32
    %c0_i32_1 = arith.constant 0 : i32
    return %c0_i32, %c0_i32_0 : i32, i32
  }
  func.func @transform_3(%arg0: i32) -> (i32, i32) {
    %c0_i32 = arith.constant 0 : i32
    %c0_i32_0 = arith.constant 0 : i32
    %c0_i32_1 = arith.constant 0 : i32
    return %c0_i32, %c0_i32_0 : i32, i32
  }
  func.func @transform_4(%arg0: i32) -> (i32, i32) {
    %c0_i32 = arith.constant 0 : i32
    %c0_i32_0 = arith.constant 0 : i32
    %c0_i32_1 = arith.constant 0 : i32
    return %c0_i32, %c0_i32_0 : i32, i32
  }
}

</mosaic_0001>

<llo_original>
// kernel: tpu_custom_call.1
$region0: #{tpu_custom_call.1}
  #allocation0 [shape = 'u32[]', space=smem, size = 0x4, offset = 0x4, fixed_abs, tag = 'smem constant byte address 0x4 - core index']
  #allocation1 [shape = 'u32[72,128]{1,0:T(1,128)}', space=vmem, size = 0x9000, scoped, tag = 'internal scratch']
  %s0 = inlined_call_operand.vmem [shape: s32[8,1], index: 0, kind: input, shape index: {}]
  %s1 = inlined_call_operand.vmem [shape: s32[1,16], index: 1, kind: input, shape index: {}]
  %s2 = inlined_call_operand.vmem [shape: f32[128,16], index: 2, kind: input, shape index: {}]
  %s3 = inlined_call_operand.vmem [shape: s32[8,1], index: 3, kind: output, shape index: {0}]
  %s4 = inlined_call_operand.hbm [shape: f32[8,128], index: 4, kind: output, shape index: {1}]
  %5 = xla_tuple %s3, %s4
  %s6 = sld [smem:[#allocation0]]
  $region30: #{tpu_custom_call.1} parent=0
    _
  %s8 = ssub.s32 1, %s6
  %s9 = scalar_select 0, %s8, %s6
  $region1: #{tpu_custom_call.1} parent=0
    #allocation2 [shape = 'u8[4096]{0}', space=vmem, size = 0x1000, scoped, tag = 'output window, operand 1, single buffered']
    #allocation3 [shape = 's32[1]{0}', space=sflag, size = 0x4, scoped, tag = 'scoped memory for tpu_custom_call.1']
    %10 = vsyncpa [#allocation3], 0
    // Predicated region
    $region2: #{tpu_custom_call.1} parent=1 // pred_check
      _
    $region3: #{tpu_custom_call.1} parent=1 // pred_check_branch
      %12 = sbr.rel (0) target = $region5
    $region4: #{tpu_custom_call.1} parent=1 // pred_region
      _
    $region5: #{tpu_custom_call.1} parent=1 // pred_fallthru
      _
    // Predicated region
    $region6: #{tpu_custom_call.1} parent=1 // pred_check
      _
    $region7: #{tpu_custom_call.1} parent=1 // pred_check_branch
      %14 = sbr.rel (0) target = $region9
    $region8: #{tpu_custom_call.1} parent=1 // pred_region
      _
    $region9: #{tpu_custom_call.1} parent=1 // pred_fallthru
      _
    // Predicated region
    $region10: #{tpu_custom_call.1} parent=1 // pred_check
      _
    $region11: #{tpu_custom_call.1} parent=1 // pred_check_branch
      %16 = sbr.rel (0) target = $region13
    $region12: #{tpu_custom_call.1} parent=1 // pred_region
      _
    $region13: #{tpu_custom_call.1} parent=1 // pred_fallthru
      _
    %v17 = vld [vmem:[%s0] sm:$0xff]
    %vm18 = vcmp.lt.s32.totalorder %v17, 0
    %v19 = vadd.s32 %v17, 16
    %v20 = vsel %vm18, %v19, %v17
    %v21 = vlaneseq
    %v22 = vand.u32 %v21, 127
    %23 = vset.pattern.permute.xlu0 0
    %24 = vperm.xlu0 %23, %v20
    %v25 = vpop.permute.xlu0 %24
    %vm26 = vcmp.eq.s32.totalorder %v22, %v25
    %v27 = vld [vmem:[%s1] sm:$0x1]
    %v28 = vperm.slane %v27, 0
    %v29 = vsel %vm26, %v28, 0
    %vm30 = vcmask 130048
    %v31 = vsel %vm30, %v29, 0
    %v32 = vand.u32 %v31, 65535
    %v33 = vshrl.u32 %v31, 16
    %v34 = vcvt.s32.f32 %v32
    %v35 = vcvt.s32.f32 %v33
    %36 = vadd.xlane.f32.xlu0 %v34
    %v37 = vpop.xlane.xlu0 %36
    %38 = vadd.xlane.f32.xlu0 %v35
    %v39 = vpop.xlane.xlu0 %38
    %v40 = vcvt.f32.s32 %v37
    %v41 = vcvt.f32.s32 %v39
    %v42 = vshll.u32 %v41, 16
    %v43 = vadd.s32 %v42, %v40
    %vm44 = vcmask 7168
    %45 = vst.msk [vmem:[%s3] sm:$0xff] %vm44, %v43
    %v46 = vld [vmem:[%s2] sm:$0xff]
    %v47 = vld [vmem:[%s2 + $0x8] sm:$0xff]
    %v48 = vld [vmem:[%s2 + $0x10] sm:$0xff]
    %v49 = vld [vmem:[%s2 + $0x18] sm:$0xff]
    %v50 = vld [vmem:[%s2 + $0x20] sm:$0xff]
    %v51 = vld [vmem:[%s2 + $0x28] sm:$0xff]
    %v52 = vld [vmem:[%s2 + $0x30] sm:$0xff]
    %v53 = vld [vmem:[%s2 + $0x38] sm:$0xff]
    %v54 = vld [vmem:[%s2 + $0x40] sm:$0xff]
    %v55 = vld [vmem:[%s2 + $0x48] sm:$0xff]
    %v56 = vld [vmem:[%s2 + $0x50] sm:$0xff]
    %v57 = vld [vmem:[%s2 + $0x58] sm:$0xff]
    %v58 = vld [vmem:[%s2 + $0x60] sm:$0xff]
    %v59 = vld [vmem:[%s2 + $0x68] sm:$0xff]
    %v60 = vld [vmem:[%s2 + $0x70] sm:$0xff]
    %v61 = vld [vmem:[%s2 + $0x78] sm:$0xff]
    %v62 = vsel %vm26, 1, 0
    %v63 = vrot.slane %v62, 1
    %v64 = vrot.slane %v62, 2
    %v65 = vrot.slane %v62, 3
    %v66 = vrot.slane %v62, 4
    %v67 = vrot.slane %v62, 5
    %v68 = vrot.slane %v62, 6
    %v69 = vrot.slane %v62, 7
    %vm70 = vcmp.ne.s32.totalorder %v63, 0
    %vm71 = vcmp.ne.s32.totalorder %v64, 0
    %vm72 = vcmp.ne.s32.totalorder %v65, 0
    %vm73 = vcmp.ne.s32.totalorder %v66, 0
    %vm74 = vcmp.ne.s32.totalorder %v67, 0
    %vm75 = vcmp.ne.s32.totalorder %v68, 0
    %vm76 = vcmp.ne.s32.totalorder %v69, 0
    %v77 = vsel %vm70, 1, 0
    %v78 = vsel %vm71, 1, 0
    %v79 = vsel %vm72, 1, 0
    %v80 = vsel %vm73, 1, 0
    %v81 = vsel %vm74, 1, 0
    %v82 = vsel %vm75, 1, 0
    %v83 = vsel %vm76, 1, 0
    %v84 = vperm.slane %v62, 0
    %v85 = vperm.slane %v77, 0
    %v86 = vperm.slane %v78, 0
    %v87 = vperm.slane %v79, 0
    %v88 = vperm.slane %v80, 0
    %v89 = vperm.slane %v81, 0
    %v90 = vperm.slane %v82, 0
    %v91 = vperm.slane %v83, 0
    %vm92 = vcmp.eq.s32.totalorder %v84, 1
    %vm93 = vcmp.eq.s32.totalorder %v85, 1
    %vm94 = vcmp.eq.s32.totalorder %v86, 1
    %vm95 = vcmp.eq.s32.totalorder %v87, 1
    %vm96 = vcmp.eq.s32.totalorder %v88, 1
    %vm97 = vcmp.eq.s32.totalorder %v89, 1
    %vm98 = vcmp.eq.s32.totalorder %v90, 1
    %vm99 = vcmp.eq.s32.totalorder %v91, 1
    %v100 = vsel %vm92, %v46, 0.0
    %v101 = vsel %vm92, %v47, 0.0
    %v102 = vsel %vm92, %v48, 0.0
    %v103 = vsel %vm92, %v49, 0.0
    %v104 = vsel %vm92, %v50, 0.0
    %v105 = vsel %vm92, %v51, 0.0
    %v106 = vsel %vm92, %v52, 0.0
    %v107 = vsel %vm92, %v53, 0.0
    %v108 = vsel %vm92, %v54, 0.0
    %v109 = vsel %vm92, %v55, 0.0
    %v110 = vsel %vm92, %v56, 0.0
    %v111 = vsel %vm92, %v57, 0.0
    %v112 = vsel %vm92, %v58, 0.0
    %v113 = vsel %vm92, %v59, 0.0
    %v114 = vsel %vm92, %v60, 0.0
    %v115 = vsel %vm92, %v61, 0.0
    %v116 = vsel %vm93, %v46, 0.0
    %v117 = vsel %vm93, %v47, 0.0
    %v118 = vsel %vm93, %v48, 0.0
    %v119 = vsel %vm93, %v49, 0.0
    %v120 = vsel %vm93, %v50, 0.0
    %v121 = vsel %vm93, %v51, 0.0
    %v122 = vsel %vm93, %v52, 0.0
    %v123 = vsel %vm93, %v53, 0.0
    %v124 = vsel %vm93, %v54, 0.0
    %v125 = vsel %vm93, %v55, 0.0
    %v126 = vsel %vm93, %v56, 0.0
    %v127 = vsel %vm93, %v57, 0.0
    %v128 = vsel %vm93, %v58, 0.0
    %v129 = vsel %vm93, %v59, 0.0
    %v130 = vsel %vm93, %v60, 0.0
    %v131 = vsel %vm93, %v61, 0.0
    %v132 = vsel %vm94, %v46, 0.0
    %v133 = vsel %vm94, %v47, 0.0
    %v134 = vsel %vm94, %v48, 0.0
    %v135 = vsel %vm94, %v49, 0.0
    %v136 = vsel %vm94, %v50, 0.0
    %v137 = vsel %vm94, %v51, 0.0
    %v138 = vsel %vm94, %v52, 0.0
    %v139 = vsel %vm94, %v53, 0.0
    %v140 = vsel %vm94, %v54, 0.0
    %v141 = vsel %vm94, %v55, 0.0
    %v142 = vsel %vm94, %v56, 0.0
    %v143 = vsel %vm94, %v57, 0.0
    %v144 = vsel %vm94, %v58, 0.0
    %v145 = vsel %vm94, %v59, 0.0
    %v146 = vsel %vm94, %v60, 0.0
    %v147 = vsel %vm94, %v61, 0.0
    %v148 = vsel %vm95, %v46, 0.0
    %v149 = vsel %vm95, %v47, 0.0
    %v150 = vsel %vm95, %v48, 0.0
    %v151 = vsel %vm95, %v49, 0.0
    %v152 = vsel %vm95, %v50, 0.0
    %v153 = vsel %vm95, %v51, 0.0
    %v154 = vsel %vm95, %v52, 0.0
    %v155 = vsel %vm95, %v53, 0.0
    %v156 = vsel %vm95, %v54, 0.0
    %v157 = vsel %vm95, %v55, 0.0
    %v158 = vsel %vm95, %v56, 0.0
    %v159 = vsel %vm95, %v57, 0.0
    %v160 = vsel %vm95, %v58, 0.0
    %v161 = vsel %vm95, %v59, 0.0
    %v162 = vsel %vm95, %v60, 0.0
    %v163 = vsel %vm95, %v61, 0.0
    %v164 = vsel %vm96, %v46, 0.0
    %v165 = vsel %vm96, %v47, 0.0
    %v166 = vsel %vm96, %v48, 0.0
    %v167 = vsel %vm96, %v49, 0.0
    %v168 = vsel %vm96, %v50, 0.0
    %v169 = vsel %vm96, %v51, 0.0
    %v170 = vsel %vm96, %v52, 0.0
    %v171 = vsel %vm96, %v53, 0.0
    %v172 = vsel %vm96, %v54, 0.0
    %v173 = vsel %vm96, %v55, 0.0
    %v174 = vsel %vm96, %v56, 0.0
    %v175 = vsel %vm96, %v57, 0.0
    %v176 = vsel %vm96, %v58, 0.0
    %v177 = vsel %vm96, %v59, 0.0
    %v178 = vsel %vm96, %v60, 0.0
    %v179 = vsel %vm96, %v61, 0.0
    %v180 = vsel %vm97, %v46, 0.0
    %v181 = vsel %vm97, %v47, 0.0
    %v182 = vsel %vm97, %v48, 0.0
    %v183 = vsel %vm97, %v49, 0.0
    %v184 = vsel %vm97, %v50, 0.0
    %v185 = vsel %vm97, %v51, 0.0
    %v186 = vsel %vm97, %v52, 0.0
    %v187 = vsel %vm97, %v53, 0.0
    %v188 = vsel %vm97, %v54, 0.0
    %v189 = vsel %vm97, %v55, 0.0
    %v190 = vsel %vm97, %v56, 0.0
    %v191 = vsel %vm97, %v57, 0.0
    %v192 = vsel %vm97, %v58, 0.0
    %v193 = vsel %vm97, %v59, 0.0
    %v194 = vsel %vm97, %v60, 0.0
    %v195 = vsel %vm97, %v61, 0.0
    %v196 = vsel %vm98, %v46, 0.0
    %v197 = vsel %vm98, %v47, 0.0
    %v198 = vsel %vm98, %v48, 0.0
    %v199 = vsel %vm98, %v49, 0.0
    %v200 = vsel %vm98, %v50, 0.0
    %v201 = vsel %vm98, %v51, 0.0
    %v202 = vsel %vm98, %v52, 0.0
    %v203 = vsel %vm98, %v53, 0.0
    %v204 = vsel %vm98, %v54, 0.0
    %v205 = vsel %vm98, %v55, 0.0
    %v206 = vsel %vm98, %v56, 0.0
    %v207 = vsel %vm98, %v57, 0.0
    %v208 = vsel %vm98, %v58, 0.0
    %v209 = vsel %vm98, %v59, 0.0
    %v210 = vsel %vm98, %v60, 0.0
    %v211 = vsel %vm98, %v61, 0.0
    %v212 = vsel %vm99, %v46, 0.0
    %v213 = vsel %vm99, %v47, 0.0
    %v214 = vsel %vm99, %v48, 0.0
    %v215 = vsel %vm99, %v49, 0.0
    %v216 = vsel %vm99, %v50, 0.0
    %v217 = vsel %vm99, %v51, 0.0
    %v218 = vsel %vm99, %v52, 0.0
    %v219 = vsel %vm99, %v53, 0.0
    %v220 = vsel %vm99, %v54, 0.0
    %v221 = vsel %vm99, %v55, 0.0
    %v222 = vsel %vm99, %v56, 0.0
    %v223 = vsel %vm99, %v57, 0.0
    %v224 = vsel %vm99, %v58, 0.0
    %v225 = vsel %vm99, %v59, 0.0
    %v226 = vsel %vm99, %v60, 0.0
    %v227 = vsel %vm99, %v61, 0.0
    %v228 = vsel %vm30, %v100, 0.0
    %229 = vadd.xlane.f32.xlu0 %v228
    %v230 = vpop.xlane.xlu0 %229
    %v231 = vsel %vm30, %v101, 0.0
    %232 = vadd.xlane.f32.xlu0 %v231
    %v233 = vpop.xlane.xlu0 %232
    %v234 = vsel %vm30, %v102, 0.0
    %235 = vadd.xlane.f32.xlu0 %v234
    %v236 = vpop.xlane.xlu0 %235
    %v237 = vsel %vm30, %v103, 0.0
    %238 = vadd.xlane.f32.xlu0 %v237
    %v239 = vpop.xlane.xlu0 %238
    %v240 = vsel %vm30, %v104, 0.0
    %241 = vadd.xlane.f32.xlu0 %v240
    %v242 = vpop.xlane.xlu0 %241
    %v243 = vsel %vm30, %v105, 0.0
    %244 = vadd.xlane.f32.xlu0 %v243
    %v245 = vpop.xlane.xlu0 %244
    %v246 = vsel %vm30, %v106, 0.0
    %247 = vadd.xlane.f32.xlu0 %v246
    %v248 = vpop.xlane.xlu0 %247
    %v249 = vsel %vm30, %v107, 0.0
    %250 = vadd.xlane.f32.xlu0 %v249
    %v251 = vpop.xlane.xlu0 %250
    %v252 = vsel %vm30, %v108, 0.0
    %253 = vadd.xlane.f32.xlu0 %v252
    %v254 = vpop.xlane.xlu0 %253
    %v255 = vsel %vm30, %v109, 0.0
    %256 = vadd.xlane.f32.xlu0 %v255
    %v257 = vpop.xlane.xlu0 %256
    %v258 = vsel %vm30, %v110, 0.0
    %259 = vadd.xlane.f32.xlu0 %v258
    %v260 = vpop.xlane.xlu0 %259
    %v261 = vsel %vm30, %v111, 0.0
    %262 = vadd.xlane.f32.xlu0 %v261
    %v263 = vpop.xlane.xlu0 %262
    %v264 = vsel %vm30, %v112, 0.0
    %265 = vadd.xlane.f32.xlu0 %v264
    %v266 = vpop.xlane.xlu0 %265
    %v267 = vsel %vm30, %v113, 0.0
    %268 = vadd.xlane.f32.xlu0 %v267
    %v269 = vpop.xlane.xlu0 %268
    %v270 = vsel %vm30, %v114, 0.0
    %271 = vadd.xlane.f32.xlu0 %v270
    %v272 = vpop.xlane.xlu0 %271
    %v273 = vsel %vm30, %v115, 0.0
    %274 = vadd.xlane.f32.xlu0 %v273
    %v275 = vpop.xlane.xlu0 %274
    %v276 = vsel %vm30, %v116, 0.0
    %277 = vadd.xlane.f32.xlu0 %v276
    %v278 = vpop.xlane.xlu0 %277
    %v279 = vsel %vm30, %v117, 0.0
    %280 = vadd.xlane.f32.xlu0 %v279
    %v281 = vpop.xlane.xlu0 %280
    %v282 = vsel %vm30, %v118, 0.0
    %283 = vadd.xlane.f32.xlu0 %v282
    %v284 = vpop.xlane.xlu0 %283
    %v285 = vsel %vm30, %v119, 0.0
    %286 = vadd.xlane.f32.xlu0 %v285
    %v287 = vpop.xlane.xlu0 %286
    %v288 = vsel %vm30, %v120, 0.0
    %289 = vadd.xlane.f32.xlu0 %v288
    %v290 = vpop.xlane.xlu0 %289
    %v291 = vsel %vm30, %v121, 0.0
    %292 = vadd.xlane.f32.xlu0 %v291
    %v293 = vpop.xlane.xlu0 %292
    %v294 = vsel %vm30, %v122, 0.0
    %295 = vadd.xlane.f32.xlu0 %v294
    %v296 = vpop.xlane.xlu0 %295
    %v297 = vsel %vm30, %v123, 0.0
    %298 = vadd.xlane.f32.xlu0 %v297
    %v299 = vpop.xlane.xlu0 %298
    %v300 = vsel %vm30, %v124, 0.0
    %301 = vadd.xlane.f32.xlu0 %v300
    %v302 = vpop.xlane.xlu0 %301
    %v303 = vsel %vm30, %v125, 0.0
    %304 = vadd.xlane.f32.xlu0 %v303
    %v305 = vpop.xlane.xlu0 %304
    %v306 = vsel %vm30, %v126, 0.0
    %307 = vadd.xlane.f32.xlu0 %v306
    %v308 = vpop.xlane.xlu0 %307
    %v309 = vsel %vm30, %v127, 0.0
    %310 = vadd.xlane.f32.xlu0 %v309
    %v311 = vpop.xlane.xlu0 %310
    %v312 = vsel %vm30, %v128, 0.0
    %313 = vadd.xlane.f32.xlu0 %v312
    %v314 = vpop.xlane.xlu0 %313
    %v315 = vsel %vm30, %v129, 0.0
    %316 = vadd.xlane.f32.xlu0 %v315
    %v317 = vpop.xlane.xlu0 %316
    %v318 = vsel %vm30, %v130, 0.0
    %319 = vadd.xlane.f32.xlu0 %v318
    %v320 = vpop.xlane.xlu0 %319
    %v321 = vsel %vm30, %v131, 0.0
    %322 = vadd.xlane.f32.xlu0 %v321
    %v323 = vpop.xlane.xlu0 %322
    %v324 = vsel %vm30, %v132, 0.0
    %325 = vadd.xlane.f32.xlu0 %v324
    %v326 = vpop.xlane.xlu0 %325
    %v327 = vsel %vm30, %v133, 0.0
    %328 = vadd.xlane.f32.xlu0 %v327
    %v329 = vpop.xlane.xlu0 %328
    %v330 = vsel %vm30, %v134, 0.0
    %331 = vadd.xlane.f32.xlu0 %v330
    %v332 = vpop.xlane.xlu0 %331
    %v333 = vsel %vm30, %v135, 0.0
    %334 = vadd.xlane.f32.xlu0 %v333
    %v335 = vpop.xlane.xlu0 %334
    %v336 = vsel %vm30, %v136, 0.0
    %337 = vadd.xlane.f32.xlu0 %v336
    %v338 = vpop.xlane.xlu0 %337
    %v339 = vsel %vm30, %v137, 0.0
    %340 = vadd.xlane.f32.xlu0 %v339
    %v341 = vpop.xlane.xlu0 %340
    %v342 = vsel %vm30, %v138, 0.0
    %343 = vadd.xlane.f32.xlu0 %v342
    %v344 = vpop.xlane.xlu0 %343
    %v345 = vsel %vm30, %v139, 0.0
    %346 = vadd.xlane.f32.xlu0 %v345
    %v347 = vpop.xlane.xlu0 %346
    %v348 = vsel %vm30, %v140, 0.0
    %349 = vadd.xlane.f32.xlu0 %v348
    %v350 = vpop.xlane.xlu0 %349
    %v351 = vsel %vm30, %v141, 0.0
    %352 = vadd.xlane.f32.xlu0 %v351
    %v353 = vpop.xlane.xlu0 %352
    %v354 = vsel %vm30, %v142, 0.0
    %355 = vadd.xlane.f32.xlu0 %v354
    %v356 = vpop.xlane.xlu0 %355
    %v357 = vsel %vm30, %v143, 0.0
    %358 = vadd.xlane.f32.xlu0 %v357
    %v359 = vpop.xlane.xlu0 %358
    %v360 = vsel %vm30, %v144, 0.0
    %361 = vadd.xlane.f32.xlu0 %v360
    %v362 = vpop.xlane.xlu0 %361
    %v363 = vsel %vm30, %v145, 0.0
    %364 = vadd.xlane.f32.xlu0 %v363
    %v365 = vpop.xlane.xlu0 %364
    %v366 = vsel %vm30, %v146, 0.0
    %367 = vadd.xlane.f32.xlu0 %v366
    %v368 = vpop.xlane.xlu0 %367
    %v369 = vsel %vm30, %v147, 0.0
    %370 = vadd.xlane.f32.xlu0 %v369
    %v371 = vpop.xlane.xlu0 %370
    %v372 = vsel %vm30, %v148, 0.0
    %373 = vadd.xlane.f32.xlu0 %v372
    %v374 = vpop.xlane.xlu0 %373
    %v375 = vsel %vm30, %v149, 0.0
    %376 = vadd.xlane.f32.xlu0 %v375
    %v377 = vpop.xlane.xlu0 %376
    %v378 = vsel %vm30, %v150, 0.0
    %379 = vadd.xlane.f32.xlu0 %v378
    %v380 = vpop.xlane.xlu0 %379
    %v381 = vsel %vm30, %v151, 0.0
    %382 = vadd.xlane.f32.xlu0 %v381
    %v383 = vpop.xlane.xlu0 %382
    %v384 = vsel %vm30, %v152, 0.0
    %385 = vadd.xlane.f32.xlu0 %v384
    %v386 = vpop.xlane.xlu0 %385
    %v387 = vsel %vm30, %v153, 0.0
    %388 = vadd.xlane.f32.xlu0 %v387
    %v389 = vpop.xlane.xlu0 %388
    %v390 = vsel %vm30, %v154, 0.0
    %391 = vadd.xlane.f32.xlu0 %v390
    %v392 = vpop.xlane.xlu0 %391
    %v393 = vsel %vm30, %v155, 0.0
    %394 = vadd.xlane.f32.xlu0 %v393
    %v395 = vpop.xlane.xlu0 %394
    %v396 = vsel %vm30, %v156, 0.0
    %397 = vadd.xlane.f32.xlu0 %v396
    %v398 = vpop.xlane.xlu0 %397
    %v399 = vsel %vm30, %v157, 0.0
    %400 = vadd.xlane.f32.xlu0 %v399
    %v401 = vpop.xlane.xlu0 %400
    %v402 = vsel %vm30, %v158, 0.0
    %403 = vadd.xlane.f32.xlu0 %v402
    %v404 = vpop.xlane.xlu0 %403
    %v405 = vsel %vm30, %v159, 0.0
    %406 = vadd.xlane.f32.xlu0 %v405
    %v407 = vpop.xlane.xlu0 %406
    %v408 = vsel %vm30, %v160, 0.0
    %409 = vadd.xlane.f32.xlu0 %v408
    %v410 = vpop.xlane.xlu0 %409
    %v411 = vsel %vm30, %v161, 0.0
    %412 = vadd.xlane.f32.xlu0 %v411
    %v413 = vpop.xlane.xlu0 %412
    %v414 = vsel %vm30, %v162, 0.0
    %415 = vadd.xlane.f32.xlu0 %v414
    %v416 = vpop.xlane.xlu0 %415
    %v417 = vsel %vm30, %v163, 0.0
    %418 = vadd.xlane.f32.xlu0 %v417
    %v419 = vpop.xlane.xlu0 %418
    %v420 = vsel %vm30, %v164, 0.0
    %421 = vadd.xlane.f32.xlu0 %v420
    %v422 = vpop.xlane.xlu0 %421
    %v423 = vsel %vm30, %v165, 0.0
    %424 = vadd.xlane.f32.xlu0 %v423
    %v425 = vpop.xlane.xlu0 %424
    %v426 = vsel %vm30, %v166, 0.0
    %427 = vadd.xlane.f32.xlu0 %v426
    %v428 = vpop.xlane.xlu0 %427
    %v429 = vsel %vm30, %v167, 0.0
    %430 = vadd.xlane.f32.xlu0 %v429
    %v431 = vpop.xlane.xlu0 %430
    %v432 = vsel %vm30, %v168, 0.0
    %433 = vadd.xlane.f32.xlu0 %v432
    %v434 = vpop.xlane.xlu0 %433
    %v435 = vsel %vm30, %v169, 0.0
    %436 = vadd.xlane.f32.xlu0 %v435
    %v437 = vpop.xlane.xlu0 %436
    %v438 = vsel %vm30, %v170, 0.0
    %439 = vadd.xlane.f32.xlu0 %v438
    %v440 = vpop.xlane.xlu0 %439
    %v441 = vsel %vm30, %v171, 0.0
    %442 = vadd.xlane.f32.xlu0 %v441
    %v443 = vpop.xlane.xlu0 %442
    %v444 = vsel %vm30, %v172, 0.0
    %445 = vadd.xlane.f32.xlu0 %v444
    %v446 = vpop.xlane.xlu0 %445
    %v447 = vsel %vm30, %v173, 0.0
    %448 = vadd.xlane.f32.xlu0 %v447
    %v449 = vpop.xlane.xlu0 %448
    %v450 = vsel %vm30, %v174, 0.0
    %451 = vadd.xlane.f32.xlu0 %v450
    %v452 = vpop.xlane.xlu0 %451
    %v453 = vsel %vm30, %v175, 0.0
    %454 = vadd.xlane.f32.xlu0 %v453
    %v455 = vpop.xlane.xlu0 %454
    %v456 = vsel %vm30, %v176, 0.0
    %457 = vadd.xlane.f32.xlu0 %v456
    %v458 = vpop.xlane.xlu0 %457
    %v459 = vsel %vm30, %v177, 0.0
    %460 = vadd.xlane.f32.xlu0 %v459
    %v461 = vpop.xlane.xlu0 %460
    %v462 = vsel %vm30, %v178, 0.0
    %463 = vadd.xlane.f32.xlu0 %v462
    %v464 = vpop.xlane.xlu0 %463
    %v465 = vsel %vm30, %v179, 0.0
    %466 = vadd.xlane.f32.xlu0 %v465
    %v467 = vpop.xlane.xlu0 %466
    %v468 = vsel %vm30, %v180, 0.0
    %469 = vadd.xlane.f32.xlu0 %v468
    %v470 = vpop.xlane.xlu0 %469
    %v471 = vsel %vm30, %v181, 0.0
    %472 = vadd.xlane.f32.xlu0 %v471
    %v473 = vpop.xlane.xlu0 %472
    %v474 = vsel %vm30, %v182, 0.0
    %475 = vadd.xlane.f32.xlu0 %v474
    %v476 = vpop.xlane.xlu0 %475
    %v477 = vsel %vm30, %v183, 0.0
    %478 = vadd.xlane.f32.xlu0 %v477
    %v479 = vpop.xlane.xlu0 %478
    %v480 = vsel %vm30, %v184, 0.0
    %481 = vadd.xlane.f32.xlu0 %v480
    %v482 = vpop.xlane.xlu0 %481
    %v483 = vsel %vm30, %v185, 0.0
    %484 = vadd.xlane.f32.xlu0 %v483
    %v485 = vpop.xlane.xlu0 %484
    %v486 = vsel %vm30, %v186, 0.0
    %487 = vadd.xlane.f32.xlu0 %v486
    %v488 = vpop.xlane.xlu0 %487
    %v489 = vsel %vm30, %v187, 0.0
    %490 = vadd.xlane.f32.xlu0 %v489
    %v491 = vpop.xlane.xlu0 %490
    %v492 = vsel %vm30, %v188, 0.0
    %493 = vadd.xlane.f32.xlu0 %v492
    %v494 = vpop.xlane.xlu0 %493
    %v495 = vsel %vm30, %v189, 0.0
    %496 = vadd.xlane.f32.xlu0 %v495
    %v497 = vpop.xlane.xlu0 %496
    %v498 = vsel %vm30, %v190, 0.0
    %499 = vadd.xlane.f32.xlu0 %v498
    %v500 = vpop.xlane.xlu0 %499
    %v501 = vsel %vm30, %v191, 0.0
    %502 = vadd.xlane.f32.xlu0 %v501
    %v503 = vpop.xlane.xlu0 %502
    %v504 = vsel %vm30, %v192, 0.0
    %505 = vadd.xlane.f32.xlu0 %v504
    %v506 = vpop.xlane.xlu0 %505
    %v507 = vsel %vm30, %v193, 0.0
    %508 = vadd.xlane.f32.xlu0 %v507
    %v509 = vpop.xlane.xlu0 %508
    %v510 = vsel %vm30, %v194, 0.0
    %511 = vadd.xlane.f32.xlu0 %v510
    %v512 = vpop.xlane.xlu0 %511
    %v513 = vsel %vm30, %v195, 0.0
    %514 = vadd.xlane.f32.xlu0 %v513
    %v515 = vpop.xlane.xlu0 %514
    %v516 = vsel %vm30, %v196, 0.0
    %517 = vadd.xlane.f32.xlu0 %v516
    %v518 = vpop.xlane.xlu0 %517
    %v519 = vsel %vm30, %v197, 0.0
    %520 = vadd.xlane.f32.xlu0 %v519
    %v521 = vpop.xlane.xlu0 %520
    %v522 = vsel %vm30, %v198, 0.0
    %523 = vadd.xlane.f32.xlu0 %v522
    %v524 = vpop.xlane.xlu0 %523
    %v525 = vsel %vm30, %v199, 0.0
    %526 = vadd.xlane.f32.xlu0 %v525
    %v527 = vpop.xlane.xlu0 %526
    %v528 = vsel %vm30, %v200, 0.0
    %529 = vadd.xlane.f32.xlu0 %v528
    %v530 = vpop.xlane.xlu0 %529
    %v531 = vsel %vm30, %v201, 0.0
    %532 = vadd.xlane.f32.xlu0 %v531
    %v533 = vpop.xlane.xlu0 %532
    %v534 = vsel %vm30, %v202, 0.0
    %535 = vadd.xlane.f32.xlu0 %v534
    %v536 = vpop.xlane.xlu0 %535
    %v537 = vsel %vm30, %v203, 0.0
    %538 = vadd.xlane.f32.xlu0 %v537
    %v539 = vpop.xlane.xlu0 %538
    %v540 = vsel %vm30, %v204, 0.0
    %541 = vadd.xlane.f32.xlu0 %v540
    %v542 = vpop.xlane.xlu0 %541
    %v543 = vsel %vm30, %v205, 0.0
    %544 = vadd.xlane.f32.xlu0 %v543
    %v545 = vpop.xlane.xlu0 %544
    %v546 = vsel %vm30, %v206, 0.0
    %547 = vadd.xlane.f32.xlu0 %v546
    %v548 = vpop.xlane.xlu0 %547
    %v549 = vsel %vm30, %v207, 0.0
    %550 = vadd.xlane.f32.xlu0 %v549
    %v551 = vpop.xlane.xlu0 %550
    %v552 = vsel %vm30, %v208, 0.0
    %553 = vadd.xlane.f32.xlu0 %v552
    %v554 = vpop.xlane.xlu0 %553
    %v555 = vsel %vm30, %v209, 0.0
    %556 = vadd.xlane.f32.xlu0 %v555
    %v557 = vpop.xlane.xlu0 %556
    %v558 = vsel %vm30, %v210, 0.0
    %559 = vadd.xlane.f32.xlu0 %v558
    %v560 = vpop.xlane.xlu0 %559
    %v561 = vsel %vm30, %v211, 0.0
    %562 = vadd.xlane.f32.xlu0 %v561
    %v563 = vpop.xlane.xlu0 %562
    %v564 = vsel %vm30, %v212, 0.0
    %565 = vadd.xlane.f32.xlu0 %v564
    %v566 = vpop.xlane.xlu0 %565
    %v567 = vsel %vm30, %v213, 0.0
    %568 = vadd.xlane.f32.xlu0 %v567
    %v569 = vpop.xlane.xlu0 %568
    %v570 = vsel %vm30, %v214, 0.0
    %571 = vadd.xlane.f32.xlu0 %v570
    %v572 = vpop.xlane.xlu0 %571
    %v573 = vsel %vm30, %v215, 0.0
    %574 = vadd.xlane.f32.xlu0 %v573
    %v575 = vpop.xlane.xlu0 %574
    %v576 = vsel %vm30, %v216, 0.0
    %577 = vadd.xlane.f32.xlu0 %v576
    %v578 = vpop.xlane.xlu0 %577
    %v579 = vsel %vm30, %v217, 0.0
    %580 = vadd.xlane.f32.xlu0 %v579
    %v581 = vpop.xlane.xlu0 %580
    %v582 = vsel %vm30, %v218, 0.0
    %583 = vadd.xlane.f32.xlu0 %v582
    %v584 = vpop.xlane.xlu0 %583
    %v585 = vsel %vm30, %v219, 0.0
    %586 = vadd.xlane.f32.xlu0 %v585
    %v587 = vpop.xlane.xlu0 %586
    %v588 = vsel %vm30, %v220, 0.0
    %589 = vadd.xlane.f32.xlu0 %v588
    %v590 = vpop.xlane.xlu0 %589
    %v591 = vsel %vm30, %v221, 0.0
    %592 = vadd.xlane.f32.xlu0 %v591
    %v593 = vpop.xlane.xlu0 %592
    %v594 = vsel %vm30, %v222, 0.0
    %595 = vadd.xlane.f32.xlu0 %v594
    %v596 = vpop.xlane.xlu0 %595
    %v597 = vsel %vm30, %v223, 0.0
    %598 = vadd.xlane.f32.xlu0 %v597
    %v599 = vpop.xlane.xlu0 %598
    %v600 = vsel %vm30, %v224, 0.0
    %601 = vadd.xlane.f32.xlu0 %v600
    %v602 = vpop.xlane.xlu0 %601
    %v603 = vsel %vm30, %v225, 0.0
    %604 = vadd.xlane.f32.xlu0 %v603
    %v605 = vpop.xlane.xlu0 %604
    %v606 = vsel %vm30, %v226, 0.0
    %607 = vadd.xlane.f32.xlu0 %v606
    %v608 = vpop.xlane.xlu0 %607
    %v609 = vsel %vm30, %v227, 0.0
    %610 = vadd.xlane.f32.xlu0 %v609
    %v611 = vpop.xlane.xlu0 %610
    %v740 = vperm.slane %v230, %v22
    %v741 = vadd.s32 %v22, 4294967288
    %v742 = vperm.slane %v233, %v741
    %vm743 = vcmask 130112
    %v744 = vsel %vm743, %v742, %v740
    %v745 = vadd.s32 %v22, 4294967280
    %v746 = vperm.slane %v236, %v745
    %vm747 = vcmask 195712
    %v748 = vsel %vm747, %v746, %v744
    %v749 = vadd.s32 %v22, 4294967272
    %v750 = vperm.slane %v239, %v749
    %vm751 = vcmask 261312
    %v752 = vsel %vm751, %v750, %v748
    %v753 = vadd.s32 %v22, 4294967264
    %v754 = vperm.slane %v242, %v753
    %vm755 = vcmask 326912
    %v756 = vsel %vm755, %v754, %v752
    %v757 = vadd.s32 %v22, 4294967256
    %v758 = vperm.slane %v245, %v757
    %vm759 = vcmask 392512
    %v760 = vsel %vm759, %v758, %v756
    %v761 = vadd.s32 %v22, 4294967248
    %v762 = vperm.slane %v248, %v761
    %vm763 = vcmask 458112
    %v764 = vsel %vm763, %v762, %v760
    %v765 = vadd.s32 %v22, 4294967240
    %v766 = vperm.slane %v251, %v765
    %vm767 = vcmask 523712
    %v768 = vsel %vm767, %v766, %v764
    %v769 = vadd.s32 %v22, 4294967232
    %v770 = vperm.slane %v254, %v769
    %vm771 = vcmask 589312
    %v772 = vsel %vm771, %v770, %v768
    %v773 = vadd.s32 %v22, 4294967224
    %v774 = vperm.slane %v257, %v773
    %vm775 = vcmask 654912
    %v776 = vsel %vm775, %v774, %v772
    %v777 = vadd.s32 %v22, 4294967216
    %v778 = vperm.slane %v260, %v777
    %vm779 = vcmask 720512
    %v780 = vsel %vm779, %v778, %v776
    %v781 = vadd.s32 %v22, 4294967208
    %v782 = vperm.slane %v263, %v781
    %vm783 = vcmask 786112
    %v784 = vsel %vm783, %v782, %v780
    %v785 = vadd.s32 %v22, 4294967200
    %v786 = vperm.slane %v266, %v785
    %vm787 = vcmask 851712
    %v788 = vsel %vm787, %v786, %v784
    %v789 = vadd.s32 %v22, 4294967192
    %v790 = vperm.slane %v269, %v789
    %vm791 = vcmask 917312
    %v792 = vsel %vm791, %v790, %v788
    %v793 = vadd.s32 %v22, 4294967184
    %v794 = vperm.slane %v272, %v793
    %vm795 = vcmask 982912
    %v796 = vsel %vm795, %v794, %v792
    %v797 = vadd.s32 %v22, 4294967176
    %v798 = vperm.slane %v275, %v797
    %vm799 = vcmask 1048512
    %v800 = vsel %vm799, %v798, %v796
    %v801 = vperm.slane %v278, %v22
    %v802 = vperm.slane %v281, %v741
    %v803 = vsel %vm743, %v802, %v801
    %v804 = vperm.slane %v284, %v745
    %v805 = vsel %vm747, %v804, %v803
    %v806 = vperm.slane %v287, %v749
    %v807 = vsel %vm751, %v806, %v805
    %v808 = vperm.slane %v290, %v753
    %v809 = vsel %vm755, %v808, %v807
    %v810 = vperm.slane %v293, %v757
    %v811 = vsel %vm759, %v810, %v809
    %v812 = vperm.slane %v296, %v761
    %v813 = vsel %vm763, %v812, %v811
    %v814 = vperm.slane %v299, %v765
    %v815 = vsel %vm767, %v814, %v813
    %v816 = vperm.slane %v302, %v769
    %v817 = vsel %vm771, %v816, %v815
    %v818 = vperm.slane %v305, %v773
    %v819 = vsel %vm775, %v818, %v817
    %v820 = vperm.slane %v308, %v777
    %v821 = vsel %vm779, %v820, %v819
    %v822 = vperm.slane %v311, %v781
    %v823 = vsel %vm783, %v822, %v821
    %v824 = vperm.slane %v314, %v785
    %v825 = vsel %vm787, %v824, %v823
    %v826 = vperm.slane %v317, %v789
    %v827 = vsel %vm791, %v826, %v825
    %v828 = vperm.slane %v320, %v793
    %v829 = vsel %vm795, %v828, %v827
    %v830 = vperm.slane %v323, %v797
    %v831 = vsel %vm799, %v830, %v829
    %v832 = vperm.slane %v326, %v22
    %v833 = vperm.slane %v329, %v741
    %v834 = vsel %vm743, %v833, %v832
    %v835 = vperm.slane %v332, %v745
    %v836 = vsel %vm747, %v835, %v834
    %v837 = vperm.slane %v335, %v749
    %v838 = vsel %vm751, %v837, %v836
    %v839 = vperm.slane %v338, %v753
    %v840 = vsel %vm755, %v839, %v838
    %v841 = vperm.slane %v341, %v757
    %v842 = vsel %vm759, %v841, %v840
    %v843 = vperm.slane %v344, %v761
    %v844 = vsel %vm763, %v843, %v842
    %v845 = vperm.slane %v347, %v765
    %v846 = vsel %vm767, %v845, %v844
    %v847 = vperm.slane %v350, %v769
    %v848 = vsel %vm771, %v847, %v846
    %v849 = vperm.slane %v353, %v773
    %v850 = vsel %vm775, %v849, %v848
    %v851 = vperm.slane %v356, %v777
    %v852 = vsel %vm779, %v851, %v850
    %v853 = vperm.slane %v359, %v781
    %v854 = vsel %vm783, %v853, %v852
    %v855 = vperm.slane %v362, %v785
    %v856 = vsel %vm787, %v855, %v854
    %v857 = vperm.slane %v365, %v789
    %v858 = vsel %vm791, %v857, %v856
    %v859 = vperm.slane %v368, %v793
    %v860 = vsel %vm795, %v859, %v858
    %v861 = vperm.slane %v371, %v797
    %v862 = vsel %vm799, %v861, %v860
    %v863 = vperm.slane %v374, %v22
    %v864 = vperm.slane %v377, %v741
    %v865 = vsel %vm743, %v864, %v863
    %v866 = vperm.slane %v380, %v745
    %v867 = vsel %vm747, %v866, %v865
    %v868 = vperm.slane %v383, %v749
    %v869 = vsel %vm751, %v868, %v867
    %v870 = vperm.slane %v386, %v753
    %v871 = vsel %vm755, %v870, %v869
    %v872 = vperm.slane %v389, %v757
    %v873 = vsel %vm759, %v872, %v871
    %v874 = vperm.slane %v392, %v761
    %v875 = vsel %vm763, %v874, %v873
    %v876 = vperm.slane %v395, %v765
    %v877 = vsel %vm767, %v876, %v875
    %v878 = vperm.slane %v398, %v769
    %v879 = vsel %vm771, %v878, %v877
    %v880 = vperm.slane %v401, %v773
    %v881 = vsel %vm775, %v880, %v879
    %v882 = vperm.slane %v404, %v777
    %v883 = vsel %vm779, %v882, %v881
    %v884 = vperm.slane %v407, %v781
    %v885 = vsel %vm783, %v884, %v883
    %v886 = vperm.slane %v410, %v785
    %v887 = vsel %vm787, %v886, %v885
    %v888 = vperm.slane %v413, %v789
    %v889 = vsel %vm791, %v888, %v887
    %v890 = vperm.slane %v416, %v793
    %v891 = vsel %vm795, %v890, %v889
    %v892 = vperm.slane %v419, %v797
    %v893 = vsel %vm799, %v892, %v891
    %v894 = vperm.slane %v422, %v22
    %v895 = vperm.slane %v425, %v741
    %v896 = vsel %vm743, %v895, %v894
    %v897 = vperm.slane %v428, %v745
    %v898 = vsel %vm747, %v897, %v896
    %v899 = vperm.slane %v431, %v749
    %v900 = vsel %vm751, %v899, %v898
    %v901 = vperm.slane %v434, %v753
    %v902 = vsel %vm755, %v901, %v900
    %v903 = vperm.slane %v437, %v757
    %v904 = vsel %vm759, %v903, %v902
    %v905 = vperm.slane %v440, %v761
    %v906 = vsel %vm763, %v905, %v904
    %v907 = vperm.slane %v443, %v765
    %v908 = vsel %vm767, %v907, %v906
    %v909 = vperm.slane %v446, %v769
    %v910 = vsel %vm771, %v909, %v908
    %v911 = vperm.slane %v449, %v773
    %v912 = vsel %vm775, %v911, %v910
    %v913 = vperm.slane %v452, %v777
    %v914 = vsel %vm779, %v913, %v912
    %v915 = vperm.slane %v455, %v781
    %v916 = vsel %vm783, %v915, %v914
    %v917 = vperm.slane %v458, %v785
    %v918 = vsel %vm787, %v917, %v916
    %v919 = vperm.slane %v461, %v789
    %v920 = vsel %vm791, %v919, %v918
    %v921 = vperm.slane %v464, %v793
    %v922 = vsel %vm795, %v921, %v920
    %v923 = vperm.slane %v467, %v797
    %v924 = vsel %vm799, %v923, %v922
    %v925 = vperm.slane %v470, %v22
    %v926 = vperm.slane %v473, %v741
    %v927 = vsel %vm743, %v926, %v925
    %v928 = vperm.slane %v476, %v745
    %v929 = vsel %vm747, %v928, %v927
    %v930 = vperm.slane %v479, %v749
    %v931 = vsel %vm751, %v930, %v929
    %v932 = vperm.slane %v482, %v753
    %v933 = vsel %vm755, %v932, %v931
    %v934 = vperm.slane %v485, %v757
    %v935 = vsel %vm759, %v934, %v933
    %v936 = vperm.slane %v488, %v761
    %v937 = vsel %vm763, %v936, %v935
    %v938 = vperm.slane %v491, %v765
    %v939 = vsel %vm767, %v938, %v937
    %v940 = vperm.slane %v494, %v769
    %v941 = vsel %vm771, %v940, %v939
    %v942 = vperm.slane %v497, %v773
    %v943 = vsel %vm775, %v942, %v941
    %v944 = vperm.slane %v500, %v777
    %v945 = vsel %vm779, %v944, %v943
    %v946 = vperm.slane %v503, %v781
    %v947 = vsel %vm783, %v946, %v945
    %v948 = vperm.slane %v506, %v785
    %v949 = vsel %vm787, %v948, %v947
    %v950 = vperm.slane %v509, %v789
    %v951 = vsel %vm791, %v950, %v949
    %v952 = vperm.slane %v512, %v793
    %v953 = vsel %vm795, %v952, %v951
    %v954 = vperm.slane %v515, %v797
    %v955 = vsel %vm799, %v954, %v953
    %v956 = vperm.slane %v518, %v22
    %v957 = vperm.slane %v521, %v741
    %v958 = vsel %vm743, %v957, %v956
    %v959 = vperm.slane %v524, %v745
    %v960 = vsel %vm747, %v959, %v958
    %v961 = vperm.slane %v527, %v749
    %v962 = vsel %vm751, %v961, %v960
    %v963 = vperm.slane %v530, %v753
    %v964 = vsel %vm755, %v963, %v962
    %v965 = vperm.slane %v533, %v757
    %v966 = vsel %vm759, %v965, %v964
    %v967 = vperm.slane %v536, %v761
    %v968 = vsel %vm763, %v967, %v966
    %v969 = vperm.slane %v539, %v765
    %v970 = vsel %vm767, %v969, %v968
    %v971 = vperm.slane %v542, %v769
    %v972 = vsel %vm771, %v971, %v970
    %v973 = vperm.slane %v545, %v773
    %v974 = vsel %vm775, %v973, %v972
    %v975 = vperm.slane %v548, %v777
    %v976 = vsel %vm779, %v975, %v974
    %v977 = vperm.slane %v551, %v781
    %v978 = vsel %vm783, %v977, %v976
    %v979 = vperm.slane %v554, %v785
    %v980 = vsel %vm787, %v979, %v978
    %v981 = vperm.slane %v557, %v789
    %v982 = vsel %vm791, %v981, %v980
    %v983 = vperm.slane %v560, %v793
    %v984 = vsel %vm795, %v983, %v982
    %v985 = vperm.slane %v563, %v797
    %v986 = vsel %vm799, %v985, %v984
    %v987 = vperm.slane %v566, %v22
    %v988 = vperm.slane %v569, %v741
    %v989 = vsel %vm743, %v988, %v987
    %v990 = vperm.slane %v572, %v745
    %v991 = vsel %vm747, %v990, %v989
    %v992 = vperm.slane %v575, %v749
    %v993 = vsel %vm751, %v992, %v991
    %v994 = vperm.slane %v578, %v753
    %v995 = vsel %vm755, %v994, %v993
    %v996 = vperm.slane %v581, %v757
    %v997 = vsel %vm759, %v996, %v995
    %v998 = vperm.slane %v584, %v761
    %v999 = vsel %vm763, %v998, %v997
    %v1000 = vperm.slane %v587, %v765
    %v1001 = vsel %vm767, %v1000, %v999
    %v1002 = vperm.slane %v590, %v769
    %v1003 = vsel %vm771, %v1002, %v1001
    %v1004 = vperm.slane %v593, %v773
    %v1005 = vsel %vm775, %v1004, %v1003
    %v1006 = vperm.slane %v596, %v777
    %v1007 = vsel %vm779, %v1006, %v1005
    %v1008 = vperm.slane %v599, %v781
    %v1009 = vsel %vm783, %v1008, %v1007
    %v1010 = vperm.slane %v602, %v785
    %v1011 = vsel %vm787, %v1010, %v1009
    %v1012 = vperm.slane %v605, %v789
    %v1013 = vsel %vm791, %v1012, %v1011
    %v1014 = vperm.slane %v608, %v793
    %v1015 = vsel %vm795, %v1014, %v1013
    %v1016 = vperm.slane %v611, %v797
    %v1017 = vsel %vm799, %v1016, %v1015
    %vm1018 = vcmask 1041409
    %v1019 = vsel %vm1018, %v831, %v800
    %vm1020 = vcmask 1042434
    %v1021 = vsel %vm1020, %v862, %v1019
    %vm1022 = vcmask 1043459
    %v1023 = vsel %vm1022, %v893, %v1021
    %vm1024 = vcmask 1044484
    %v1025 = vsel %vm1024, %v924, %v1023
    %vm1026 = vcmask 1045509
    %v1027 = vsel %vm1026, %v955, %v1025
    %vm1028 = vcmask 1046534
    %v1029 = vsel %vm1028, %v986, %v1027
    %vm1030 = vcmask 1047559
    %v1031 = vsel %vm1030, %v1017, %v1029
    %1033 = vst [vmem:[#allocation2] sm:$0xff] %v1031
    // Predicated region
    $region14: #{tpu_custom_call.1} parent=1 // pred_check
      _
    $region15: #{tpu_custom_call.1} parent=1 // pred_check_branch
      %1035 = sbr.rel (0) target = $region17
    $region16: #{tpu_custom_call.1} parent=1 // pred_region
      _
    $region17: #{tpu_custom_call.1} parent=1 // pred_fallthru
      _
    // Predicated region
    $region18: #{tpu_custom_call.1} parent=1 // pred_check
      _
    $region19: #{tpu_custom_call.1} parent=1 // pred_check_branch
      %1037 = sbr.rel (0) target = $region21
    $region20: #{tpu_custom_call.1} parent=1 // pred_region
      %1039 = vsyncadd [#allocation3], 0
      %s1041 = sshll.u32 [#allocation2], 4
      %s1042 = int_to_ptr.vmem [resolvable:$true] %s1041
      %s1043 = sshll.u32 %s4, 4
      %s1044 = int_to_ptr.hbm [resolvable:$true] %s1043
      %1046 = dma.vmem_to_hbm [thread:$0]  %s1042, 128, %s1044, [#allocation3]
    $region21: #{tpu_custom_call.1} parent=1 // pred_fallthru
      _
    // Predicated region
    $region22: #{tpu_custom_call.1} parent=1 // pred_check
      _
    $region23: #{tpu_custom_call.1} parent=1 // pred_check_branch
      %1048 = sbr.rel (0) target = $region25
    $region24: #{tpu_custom_call.1} parent=1 // pred_region
      _
    $region25: #{tpu_custom_call.1} parent=1 // pred_fallthru
      _
    // Predicated region
    $region26: #{tpu_custom_call.1} parent=1 // pred_check
      _
    $region27: #{tpu_custom_call.1} parent=1 // pred_check_branch
      %1050 = sbr.rel (0) target = $region29
    $region28: #{tpu_custom_call.1} parent=1 // pred_region
      %1052 = dma.done [#allocation3], 128
    $region29: #{tpu_custom_call.1} parent=1 // pred_fallthru
      _
    %1053 = vsyncpa [#allocation3], 1

</llo_original>
